<compile_context>
chip_gen: v5e
topology: v5e:2x2
jax: 0.10.0
libtpu: 0.0.40
codegen_flags: <defaults>
</compile_context>

<pallas_src>
import functools

import numpy as np
import jax
import jax.numpy as jnp
from jax.experimental import pallas as pl
from jax.experimental.pallas import tpu as pltpu


def _round_up(x, m):
    return (x + m - 1) // m * m


def _pick_tm(m, max_tm):
    """Largest 128-multiple tile of the M (lane) axis.

    Prefers a tile that divides M exactly (no padding / slicing copies) and,
    when M allows it, leaves >= 2 tiles so the "parallel" axis can shard across
    v7x's two TensorCores.
    """
    cap = max(128, min(max_tm, _round_up((m + 1) // 2, 128)))
    if m % 128 == 0:
        best = 128
        d = 128
        while d <= min(m, cap):
            if m % d == 0:
                best = d
            d += 128
        return best, m
    tm = min(cap, _round_up(m, 128))
    return tm, _round_up(m, tm)


def _pick_tk(kc, max_tk):
    """Largest 128-multiple divisor of Kc not exceeding max_tk (else no split)."""
    if kc <= max_tk:
        return kc
    best = kc
    for d in range(128, max_tk + 1, 128):
        if kc % d == 0:
            best = d
    return best


def _vmem_limit_bytes():
    try:
        cap = pltpu.get_tpu_info().vmem_capacity_bytes
    except Exception:
        cap = 64 * 1024 * 1024
    # half of physical VMEM: 64 MiB on v5e/v6e, 32 MiB on v7x
    return int(min(cap // 2, 100 * 1024 * 1024))


def _conv_stats_kernel(w_ref, p_ref, y_ref, ssum_ref, ssq_ref, acc_ref):
    k = pl.program_id(1)

    @pl.when(k == 0)
    def _():
        acc_ref[...] = jnp.zeros_like(acc_ref)

    # conv as one (Co, tk) x (tk, tm) MXU contraction, f32 accumulation.
    acc_ref[...] += jnp.dot(w_ref[...], p_ref[...],
                            preferred_element_type=jnp.float32)

    @pl.when(k == pl.num_programs(1) - 1)
    def _():
        acc = acc_ref[...]
        y_ref[...] = acc.astype(y_ref.dtype)
        # Per-tile BatchNorm partials: lane reduces (XLU slot, free next to the
        # MXU). Zero-padded M columns contribute nothing, so no row mask.
        ssum_ref[...] = jnp.sum(acc, axis=1, keepdims=True)[None]
        ssq_ref[...] = jnp.sum(acc * acc, axis=1, keepdims=True)[None]


def _bn_lrelu_kernel(y_ref, scale_ref, shift_ref, o_ref):
    z = y_ref[...].astype(jnp.float32) * scale_ref[...] + shift_ref[...]
    o_ref[...] = jnp.where(z >= 0.0, z, 0.2 * z).astype(o_ref.dtype)


def down_block(x_nchw, w_oihw, gamma, beta, *, stride=2, eps=1e-5,
               compute_dtype=jnp.bfloat16, tile_m=1024, tile_k=2048):
    N, Ci, H, W = x_nchw.shape
    Co, _, KH, KW = w_oihw.shape

    # glue: channel-major layout + reflect pad of 1 (padding_mode='reflect').
    xc = jnp.transpose(x_nchw, (1, 0, 2, 3))                       # (Ci,N,H,W)
    xpad = jnp.pad(xc, ((0, 0), (0, 0), (1, 1), (1, 1)), mode="reflect")
    Hp, Wp = H + 2, W + 2
    Ho = (Hp - KH) // stride + 1
    Wo = (Wp - KW) // stride + 1
    M = N * Ho * Wo
    Kc = KH * KW * Ci

    # im2col, transposed: pT is (Kc, M) so the long M axis is the lane dim of
    # every Pallas block downstream; Kc row order is (kh, kw, ci).
    # TODO(synk): for large inputs, stream xpad directly in-kernel (manual
    # strided DMAs with memory_space=pl.ANY) to avoid materializing the ~4x
    # im2col slab in HBM; that XLA glue is the remaining HBM hot spot.
    patches = []
    for kh in range(KH):
        for kw in range(KW):
            patches.append(
                xpad[:, :, kh:kh + stride * Ho:stride,
                           kw:kw + stride * Wo:stride].reshape(Ci, M))
    pT = jnp.concatenate(patches, axis=0).astype(compute_dtype)     # (Kc, M)
    wmat = (jnp.transpose(w_oihw, (0, 2, 3, 1))
            .reshape(Co, Kc).astype(compute_dtype))                 # (Co, Kc)

    tm, Mp = _pick_tm(M, tile_m)
    nt = Mp // tm
    if Mp != M:
        pT = jnp.pad(pT, ((0, 0), (0, Mp - M)))   # zero cols: stats-neutral
    tk = _pick_tk(Kc, tile_k)
    kt = Kc // tk
    y_dtype = np.dtype(compute_dtype)
    vmem_limit = _vmem_limit_bytes()

    # ---- pass 1: conv tiles (lane-dense) + per-tile partial (sum, sumsq) ----
    y, ssum, ssq = pl.pallas_call(
        _conv_stats_kernel,
        out_shape=(jax.ShapeDtypeStruct((Co, Mp), y_dtype),
                   jax.ShapeDtypeStruct((nt, Co, 1), jnp.float32),
                   jax.ShapeDtypeStruct((nt, Co, 1), jnp.float32)),
        grid_spec=pltpu.PrefetchScalarGridSpec(
            num_scalar_prefetch=0,
            grid=(nt, kt),
            in_specs=[
                pl.BlockSpec((Co, tk), lambda i, k: (0, k)),
                pl.BlockSpec((tk, tm), lambda i, k: (k, i)),
            ],
            out_specs=[
                pl.BlockSpec((Co, tm), lambda i, k: (0, i)),
                pl.BlockSpec((1, Co, 1), lambda i, k: (i, 0, 0)),
                pl.BlockSpec((1, Co, 1), lambda i, k: (i, 0, 0)),
            ],
            scratch_shapes=[pltpu.VMEM((Co, tm), jnp.float32)],
        ),
        compiler_params=pltpu.CompilerParams(
            dimension_semantics=("parallel", "arbitrary"),
            vmem_limit_bytes=vmem_limit),
    )(wmat, pT)

    # ---- tiny global reduction + BN affine folding (f32, in JAX) ----
    tsum = jnp.sum(ssum[:, :, 0], axis=0)
    tsq = jnp.sum(ssq[:, :, 0], axis=0)
    mean = tsum / M
    var = jnp.maximum(tsq / M - mean * mean, 0.0)   # biased var, clamp >= 0
    inv = jax.lax.rsqrt(var + eps)
    g32 = gamma.astype(jnp.float32)
    b32 = beta.astype(jnp.float32)
    scale = (g32 * inv).reshape(Co, 1)
    shift = (b32 - mean * g32 * inv).reshape(Co, 1)

    # ---- pass 2: BN affine + LeakyReLU(0.2) on large lane-dense tiles ----
    bytes_per_col = Co * (y_dtype.itemsize + 4) * 2        # in + out, 2-buffered
    max_cols = max(tm, (16 * 1024 * 1024) // max(bytes_per_col, 1))
    d_cap = max(1, max_cols // tm)
    d = 1
    for c in range(1, nt + 1):
        if nt % c == 0 and c <= d_cap:
            d = c
    tm2 = tm * d
    nt2 = nt // d

    out = pl.pallas_call(
        _bn_lrelu_kernel,
        out_shape=jax.ShapeDtypeStruct((Co, Mp), jnp.float32),
        grid_spec=pltpu.PrefetchScalarGridSpec(
            num_scalar_prefetch=0,
            grid=(nt2,),
            in_specs=[
                pl.BlockSpec((Co, tm2), lambda i: (0, i)),
                pl.BlockSpec((Co, 1), lambda i: (0, 0)),
                pl.BlockSpec((Co, 1), lambda i: (0, 0)),
            ],
            out_specs=pl.BlockSpec((Co, tm2), lambda i: (0, i)),
        ),
        compiler_params=pltpu.CompilerParams(
            dimension_semantics=("parallel",),
            vmem_limit_bytes=vmem_limit),
    )(y, scale, shift)

    if Mp != M:
        out = out[:, :M]
    out = out.reshape(Co, N, Ho, Wo)
    return jnp.transpose(out, (1, 0, 2, 3))   # cheap leading-dim swap -> NCHW


def _reference(x_nchw, w_oihw, gamma, beta, *, stride=2):
    xpad = jnp.pad(x_nchw, ((0, 0), (0, 0), (1, 1), (1, 1)), mode="reflect")
    y = jax.lax.conv_general_dilated(
        xpad, w_oihw, (stride, stride), "VALID",
        dimension_numbers=("NCHW", "OIHW", "NCHW"))
    mean = jnp.mean(y, axis=(0, 2, 3), keepdims=True)
    var = jnp.mean(jnp.square(y - mean), axis=(0, 2, 3), keepdims=True)
    yhat = (y - mean) * jax.lax.rsqrt(var + 1e-5)
    z = gamma.reshape(1, -1, 1, 1) * yhat + beta.reshape(1, -1, 1, 1)
    return jnp.where(z >= 0, z, 0.2 * z)


if __name__ == "__main__":
    key = jax.random.PRNGKey(0)
    kx, kw, kg, kb = jax.random.split(key, 4)

    N, Ci, Co, H, W = 2, 4, 8, 16, 16   # DownBlock(in_channels=4, out_channels=8)
    x = jax.random.normal(kx, (N, Ci, H, W), dtype=jnp.float32)
    w = jax.random.normal(kw, (Co, Ci, 4, 4), dtype=jnp.float32) * 0.1
    gamma = 1.0 + 0.1 * jax.random.normal(kg, (Co,), dtype=jnp.float32)
    beta = 0.1 * jax.random.normal(kb, (Co,), dtype=jnp.float32)

    ref = _reference(x, w, gamma, beta)

    # f32 MXU path: f32 intermediate, tight parity with the f32 reference.
    fwd_f32 = jax.jit(functools.partial(down_block, compute_dtype=jnp.float32))
    out_f32 = jax.block_until_ready(fwd_f32(x, w, gamma, beta))
    assert out_f32.shape == (N, Co, H // 2, W // 2), out_f32.shape
    assert jnp.allclose(out_f32, ref, atol=1e-4, rtol=1e-4), float(
        jnp.max(jnp.abs(out_f32 - ref)))

    # bf16 MXU path (default / fast): bf16 inputs + bf16 intermediate, f32
    # accumulation and f32 BN statistics; looser tolerance for quantization.
    fwd_bf16 = jax.jit(down_block)
    out_bf16 = jax.block_until_ready(fwd_bf16(x, w, gamma, beta))
    assert out_bf16.shape == (N, Co, H // 2, W // 2), out_bf16.shape
    assert jnp.allclose(out_bf16, ref, atol=5e-2, rtol=5e-2), float(
        jnp.max(jnp.abs(out_bf16 - ref)))

    print("KERNEL_OK")
</pallas_src>

<mosaic_0001>
module attributes {stable_mosaic.version = 11 : i64} {
  func.func @_conv_stats_kernel(%arg0: i32, %arg1: i32, %arg2: memref<8x64xf32, #tpu.memory_space<vmem>>, %arg3: memref<64x128xf32, #tpu.memory_space<vmem>>, %arg4: memref<8x128xf32, #tpu.memory_space<vmem>>, %arg5: memref<1x8x1xf32, #tpu.memory_space<vmem>>, %arg6: memref<1x8x1xf32, #tpu.memory_space<vmem>>, %arg7: memref<8x128xf32, #tpu.memory_space<vmem>>) attributes {dimension_semantics = [#tpu.dimension_semantics<parallel>, #tpu.dimension_semantics<arbitrary>], iteration_bounds = array<i64: 1, 1>, scalar_prefetch = 0 : i64, scratch_operands = 1 : i64, tpu.core_type = #tpu.core_type<tc>, window_params = [{transform_indices = @transform_0, window_bounds = array<i64: 8, 64>}, {transform_indices = @transform_1, window_bounds = array<i64: 64, 128>}, {transform_indices = @transform_2, window_bounds = array<i64: 8, 128>}, {transform_indices = @transform_3, window_bounds = array<i64: 1, 8, 1>}, {transform_indices = @transform_4, window_bounds = array<i64: 1, 8, 1>}]} {
    %c0_i32 = arith.constant 0 : i32
    %0 = arith.cmpi eq, %arg1, %c0_i32 : i32
    %1 = arith.extui %0 : i1 to i32
    %c0_i32_0 = arith.constant 0 : i32
    %2 = arith.cmpi ne, %1, %c0_i32_0 : i32
    scf.if %2 {
      %cst_10 = arith.constant 0.000000e+00 : f32
      %12 = vector.broadcast %cst_10 : f32 to vector<8x128xf32>
      %c0_11 = arith.constant 0 : index
      %c0_12 = arith.constant 0 : index
      %13 = vector.load %arg7[%c0_11, %c0_12] : memref<8x128xf32, #tpu.memory_space<vmem>>, vector<8x128xf32>
      tpu.vector_store %arg7[%c0_11, %c0_12], %12 {strides = array<i32>} : memref<8x128xf32, #tpu.memory_space<vmem>>, vector<8x128xf32>,
    } else {
    }
    %c0 = arith.constant 0 : index
    %c0_1 = arith.constant 0 : index
    %3 = vector.load %arg7[%c0, %c0_1] : memref<8x128xf32, #tpu.memory_space<vmem>>, vector<8x128xf32>
    %c0_2 = arith.constant 0 : index
    %c0_3 = arith.constant 0 : index
    %4 = vector.load %arg2[%c0_2, %c0_3] : memref<8x64xf32, #tpu.memory_space<vmem>>, vector<8x64xf32>
    %c0_4 = arith.constant 0 : index
    %c0_5 = arith.constant 0 : index
    %5 = vector.load %arg3[%c0_4, %c0_5] : memref<64x128xf32, #tpu.memory_space<vmem>>, vector<64x128xf32>
    %cst = arith.constant dense<0.000000e+00> : vector<8x128xf32>
    %6 = tpu.matmul %4, %5, %cst {dimension_numbers = #tpu.dot_dimension_numbers<[1], [0], [0], [1], [0, 0, 1, 1], [], []>} : vector<8x64xf32>, vector<64x128xf32>, vector<8x128xf32> -> vector<8x128xf32>
    %7 = arith.addf %3, %6 : vector<8x128xf32>
    %c0_6 = arith.constant 0 : index
    %c0_7 = arith.constant 0 : index
    %8 = vector.load %arg7[%c0_6, %c0_7] : memref<8x128xf32, #tpu.memory_space<vmem>>, vector<8x128xf32>
    tpu.vector_store %arg7[%c0_6, %c0_7], %7 {strides = array<i32>} : memref<8x128xf32, #tpu.memory_space<vmem>>, vector<8x128xf32>,
    %c0_i32_8 = arith.constant 0 : i32
    %9 = arith.cmpi eq, %arg1, %c0_i32_8 : i32
    %10 = arith.extui %9 : i1 to i32
    %c0_i32_9 = arith.constant 0 : i32
    %11 = arith.cmpi ne, %10, %c0_i32_9 : i32
    scf.if %11 {
      %c0_10 = arith.constant 0 : index
      %c0_11 = arith.constant 0 : index
      %12 = vector.load %arg7[%c0_10, %c0_11] : memref<8x128xf32, #tpu.memory_space<vmem>>, vector<8x128xf32>
      %c0_12 = arith.constant 0 : index
      %c0_13 = arith.constant 0 : index
      %13 = vector.load %arg4[%c0_12, %c0_13] : memref<8x128xf32, #tpu.memory_space<vmem>>, vector<8x128xf32>
      tpu.vector_store %arg4[%c0_12, %c0_13], %12 {strides = array<i32>} : memref<8x128xf32, #tpu.memory_space<vmem>>, vector<8x128xf32>,
      %cst_14 = arith.constant dense<0.000000e+00> : vector<8xf32>
      %14 = vector.multi_reduction <add>, %12, %cst_14 [1] : vector<8x128xf32> to vector<8xf32>
      %15 = vector.shape_cast %14 : vector<8xf32> to vector<8x1xf32>
      %16 = vector.shape_cast %15 : vector<8x1xf32> to vector<1x8x1xf32>
      %c0_15 = arith.constant 0 : index
      %c0_16 = arith.constant 0 : index
      %c0_17 = arith.constant 0 : index
      %17 = vector.load %arg5[%c0_15, %c0_16, %c0_17] : memref<1x8x1xf32, #tpu.memory_space<vmem>>, vector<1x8x1xf32>
      tpu.vector_store %arg5[%c0_15, %c0_16, %c0_17], %16 {strides = array<i32>} : memref<1x8x1xf32, #tpu.memory_space<vmem>>, vector<1x8x1xf32>,
      %18 = arith.mulf %12, %12 : vector<8x128xf32>
      %cst_18 = arith.constant dense<0.000000e+00> : vector<8xf32>
      %19 = vector.multi_reduction <add>, %18, %cst_18 [1] : vector<8x128xf32> to vector<8xf32>
      %20 = vector.shape_cast %19 : vector<8xf32> to vector<8x1xf32>
      %21 = vector.shape_cast %20 : vector<8x1xf32> to vector<1x8x1xf32>
      %c0_19 = arith.constant 0 : index
      %c0_20 = arith.constant 0 : index
      %c0_21 = arith.constant 0 : index
      %22 = vector.load %arg6[%c0_19, %c0_20, %c0_21] : memref<1x8x1xf32, #tpu.memory_space<vmem>>, vector<1x8x1xf32>
      tpu.vector_store %arg6[%c0_19, %c0_20, %c0_21], %21 {strides = array<i32>} : memref<1x8x1xf32, #tpu.memory_space<vmem>>, vector<1x8x1xf32>,
    } else {
    }
    return
  }
  func.func @transform_0(%arg0: i32, %arg1: i32) -> (i32, i32) {
    %c0_i32 = arith.constant 0 : i32
    %c0_i32_0 = arith.constant 0 : i32
    return %c0_i32, %arg1 : i32, i32
  }
  func.func @transform_1(%arg0: i32, %arg1: i32) -> (i32, i32) {
    %c0_i32 = arith.constant 0 : i32
    return %arg1, %arg0 : i32, i32
  }
  func.func @transform_2(%arg0: i32, %arg1: i32) -> (i32, i32) {
    %c0_i32 = arith.constant 0 : i32
    %c0_i32_0 = arith.constant 0 : i32
    return %c0_i32, %arg0 : i32, i32
  }
  func.func @transform_3(%arg0: i32, %arg1: i32) -> (i32, i32, i32) {
    %c0_i32 = arith.constant 0 : i32
    %c0_i32_0 = arith.constant 0 : i32
    %c0_i32_1 = arith.constant 0 : i32
    return %arg0, %c0_i32, %c0_i32_0 : i32, i32, i32
  }
  func.func @transform_4(%arg0: i32, %arg1: i32) -> (i32, i32, i32) {
    %c0_i32 = arith.constant 0 : i32
    %c0_i32_0 = arith.constant 0 : i32
    %c0_i32_1 = arith.constant 0 : i32
    return %arg0, %c0_i32, %c0_i32_0 : i32, i32, i32
  }
}

module attributes {stable_mosaic.version = 11 : i64} {
  func.func @_bn_lrelu_kernel(%arg0: i32, %arg1: memref<8x128xf32, #tpu.memory_space<vmem>>, %arg2: memref<8x1xf32, #tpu.memory_space<vmem>>, %arg3: memref<8x1xf32, #tpu.memory_space<vmem>>, %arg4: memref<8x128xf32, #tpu.memory_space<vmem>>) attributes {dimension_semantics = [#tpu.dimension_semantics<parallel>], iteration_bounds = array<i64: 1>, scalar_prefetch = 0 : i64, scratch_operands = 0 : i64, tpu.core_type = #tpu.core_type<tc>, window_params = [{transform_indices = @transform_0, window_bounds = array<i64: 8, 128>}, {pipeline_mode = #tpu.pipeline_mode<synchronous>, transform_indices = @transform_1, window_bounds = array<i64: 8, 1>}, {pipeline_mode = #tpu.pipeline_mode<synchronous>, transform_indices = @transform_2, window_bounds = array<i64: 8, 1>}, {transform_indices = @transform_3, window_bounds = array<i64: 8, 128>}]} {
    %c0 = arith.constant 0 : index
    %c0_0 = arith.constant 0 : index
    %0 = vector.load %arg1[%c0, %c0_0] : memref<8x128xf32, #tpu.memory_space<vmem>>, vector<8x128xf32>
    %c0_1 = arith.constant 0 : index
    %c0_2 = arith.constant 0 : index
    %1 = vector.load %arg2[%c0_1, %c0_2] : memref<8x1xf32, #tpu.memory_space<vmem>>, vector<8x1xf32>
    %2 = vector.broadcast %1 : vector<8x1xf32> to vector<8x128xf32>
    %3 = arith.mulf %0, %2 : vector<8x128xf32>
    %c0_3 = arith.constant 0 : index
    %c0_4 = arith.constant 0 : index
    %4 = vector.load %arg3[%c0_3, %c0_4] : memref<8x1xf32, #tpu.memory_space<vmem>>, vector<8x1xf32>
    %5 = vector.broadcast %4 : vector<8x1xf32> to vector<8x128xf32>
    %6 = arith.addf %3, %5 : vector<8x128xf32>
    %cst = arith.constant 0.000000e+00 : f32
    %7 = vector.broadcast %cst : f32 to vector<8x128xf32>
    %8 = arith.cmpf oge, %6, %7 : vector<8x128xf32>
    %cst_5 = arith.constant 2.000000e-01 : f32
    %9 = vector.broadcast %cst_5 : f32 to vector<8x128xf32>
    %10 = arith.mulf %9, %6 : vector<8x128xf32>
    %11 = arith.select %8, %6, %10 : vector<8x128xi1>, vector<8x128xf32>
    %c0_6 = arith.constant 0 : index
    %c0_7 = arith.constant 0 : index
    %12 = vector.load %arg4[%c0_6, %c0_7] : memref<8x128xf32, #tpu.memory_space<vmem>>, vector<8x128xf32>
    tpu.vector_store %arg4[%c0_6, %c0_7], %11 {strides = array<i32>} : memref<8x128xf32, #tpu.memory_space<vmem>>, vector<8x128xf32>,
    return
  }
  func.func @transform_0(%arg0: i32) -> (i32, i32) {
    %c0_i32 = arith.constant 0 : i32
    %c0_i32_0 = arith.constant 0 : i32
    return %c0_i32, %arg0 : i32, i32
  }
  func.func @transform_1(%arg0: i32) -> (i32, i32) {
    %c0_i32 = arith.constant 0 : i32
    %c0_i32_0 = arith.constant 0 : i32
    %c0_i32_1 = arith.constant 0 : i32
    return %c0_i32, %c0_i32_0 : i32, i32
  }
  func.func @transform_2(%arg0: i32) -> (i32, i32) {
    %c0_i32 = arith.constant 0 : i32
    %c0_i32_0 = arith.constant 0 : i32
    %c0_i32_1 = arith.constant 0 : i32
    return %c0_i32, %c0_i32_0 : i32, i32
  }
  func.func @transform_3(%arg0: i32) -> (i32, i32) {
    %c0_i32 = arith.constant 0 : i32
    %c0_i32_0 = arith.constant 0 : i32
    return %c0_i32, %arg0 : i32, i32
  }
}

</mosaic_0001>

<llo_original>
// kernel: down_block.3
$region0: #{down_block.3}
  #allocation0 [shape = 'u32[]', space=smem, size = 0x4, offset = 0x4, fixed_abs, tag = 'smem constant byte address 0x4 - core index']
  #allocation1 [shape = 'u32[72,128]{1,0:T(1,128)}', space=vmem, size = 0x9000, scoped, tag = 'internal scratch']
  %s0 = inlined_call_operand.vmem [shape: f32[8,128], index: 0, kind: input, shape index: {}]
  %s1 = inlined_call_operand.vmem [shape: f32[8,1], index: 1, kind: input, shape index: {}]
  %s2 = inlined_call_operand.vmem [shape: f32[8,1], index: 2, kind: input, shape index: {}]
  %s3 = inlined_call_operand.vmem [shape: f32[8,128], index: 3, kind: output, shape index: {}]
  %s4 = sld [smem:[#allocation0]]
  $region22: #{down_block.3} parent=0
    _
  %s6 = ssub.s32 1, %s4
  %s7 = scalar_select 0, %s6, %s4
  // Predicated region
  $region2: #{down_block.3} parent=0 // pred_check
    _
  $region3: #{down_block.3} parent=0 // pred_check_branch
    %9 = sbr.rel (0) target = $region5
  $region4: #{down_block.3} parent=0 // pred_region
    _
  $region5: #{down_block.3} parent=0 // pred_fallthru
    _
  // Predicated region
  $region6: #{down_block.3} parent=0 // pred_check
    _
  $region7: #{down_block.3} parent=0 // pred_check_branch
    %11 = sbr.rel (0) target = $region9
  $region8: #{down_block.3} parent=0 // pred_region
    _
  $region9: #{down_block.3} parent=0 // pred_fallthru
    _
  // Predicated region
  $region10: #{down_block.3} parent=0 // pred_check
    _
  $region11: #{down_block.3} parent=0 // pred_check_branch
    %13 = sbr.rel (0) target = $region13
  $region12: #{down_block.3} parent=0 // pred_region
    _
  $region13: #{down_block.3} parent=0 // pred_fallthru
    _
  %v14 = vld [vmem:[%s0] sm:$0xff]
  %v15 = vld [vmem:[%s1] sm:$0xff]
  %17 = vset.pattern.permute.xlu0 0
  %18 = vperm.xlu0 %17, %v15
  %v19 = vpop.permute.xlu0 %18
  %v21 = vmul.f32 %v14, %v19
  %v22 = vld [vmem:[%s2] sm:$0xff]
  %24 = vset.pattern.permute.xlu0 0
  %25 = vperm.xlu0 %24, %v22
  %v26 = vpop.permute.xlu0 %25
  %v28 = vadd.f32 %v21, %v26
  %vm29 = vcmp.ge.f32.partialorder %v28, 0.0
  %v30 = vmul.f32 %v28, 0.2
  %v31 = vsel %vm29, %v28, %v30
  %32 = vst [vmem:[%s3] sm:$0xff] %v31
  // Predicated region
  $region14: #{down_block.3} parent=0 // pred_check
    _
  $region15: #{down_block.3} parent=0 // pred_check_branch
    %34 = sbr.rel (0) target = $region17
  $region16: #{down_block.3} parent=0 // pred_region
    _
  $region17: #{down_block.3} parent=0 // pred_fallthru
    _
  // Predicated region
  $region18: #{down_block.3} parent=0 // pred_check
    _
  $region19: #{down_block.3} parent=0 // pred_check_branch
    %36 = sbr.rel (0) target = $region21
  $region20: #{down_block.3} parent=0 // pred_region
    _
  $region21: #{down_block.3} parent=0 // pred_fallthru
    _

// kernel: down_block.2
$region0: #{down_block.2}
  #allocation0 [shape = 'u32[]', space=smem, size = 0x4, offset = 0x4, fixed_abs, tag = 'smem constant byte address 0x4 - core index']
  #allocation1 [shape = 'u32[72,128]{1,0:T(1,128)}', space=vmem, size = 0x9000, scoped, tag = 'internal scratch']
  #allocation2 [shape = 'f32[8,128]{1,0:T(8,128)}', space=vmem, size = 0x1000, scoped, tag = 'scratch operand']
  %s0 = inlined_call_operand.vmem [shape: f32[8,64], index: 0, kind: input, shape index: {}]
  %s1 = inlined_call_operand.vmem [shape: f32[64,128], index: 1, kind: input, shape index: {}]
  %s2 = inlined_call_operand.vmem [shape: f32[8,128], index: 2, kind: output, shape index: {0}]
  %s3 = inlined_call_operand.vmem [shape: f32[1,8,1], index: 3, kind: output, shape index: {1}]
  %s4 = inlined_call_operand.vmem [shape: f32[1,8,1], index: 4, kind: output, shape index: {2}]
  %5 = xla_tuple %s2, %s3, %s4
  %s6 = sld [smem:[#allocation0]]
  $region42: #{down_block.2} parent=0
    _
  %s8 = ssub.s32 1, %s6
  %s9 = scalar_select 0, %s8, %s6
  // Predicated region
  $region2: #{down_block.2} parent=0 // pred_check
    _
  $region3: #{down_block.2} parent=0 // pred_check_branch
    %11 = sbr.rel (0) target = $region5
  $region4: #{down_block.2} parent=0 // pred_region
    _
  $region5: #{down_block.2} parent=0 // pred_fallthru
    _
  // Predicated region
  $region6: #{down_block.2} parent=0 // pred_check
    _
  $region7: #{down_block.2} parent=0 // pred_check_branch
    %13 = sbr.rel (0) target = $region9
  $region8: #{down_block.2} parent=0 // pred_region
    _
  $region9: #{down_block.2} parent=0 // pred_fallthru
    _
  %p14 = scmp.eq.s32.totalorder 0, 0
  // Predicated region
  $region10: #{down_block.2} parent=0 // pred_check
    %p15 = pneg %p14
  $region11: #{down_block.2} parent=0 // pred_check_branch
    %17 = sbr.rel (%p15) target = $region13
  $region12: #{down_block.2} parent=0 // pred_region
    %18 = vst [vmem:[#allocation2] sm:$0xff] 0.0
  $region13: #{down_block.2} parent=0 // pred_fallthru
    _
  %v19 = vld [vmem:[#allocation2] sm:$0xff]
  %v20 = vld [vmem:[%s0] sm:$0xff]
  %v21 = vld [vmem:[%s1] sm:$0xff]
  %v22 = vld [vmem:[%s1 + $0x8] sm:$0xff]
  %v23 = vld [vmem:[%s1 + $0x10] sm:$0xff]
  %v24 = vld [vmem:[%s1 + $0x18] sm:$0xff]
  %v25 = vld [vmem:[%s1 + $0x20] sm:$0xff]
  %v26 = vld [vmem:[%s1 + $0x28] sm:$0xff]
  %v27 = vld [vmem:[%s1 + $0x30] sm:$0xff]
  %v28 = vld [vmem:[%s1 + $0x38] sm:$0xff]
  %vm29 = vcmask 523264
  %v31 = vsel %vm29, %v20, 0
  %33 = vmatpush.msra.mxu0 0.0
  %34 = vmatpush.msra.mxu0 0.0
  %35 = vmatpush.msra.mxu0 0.0
  %36 = vmatpush.msra.mxu0 0.0
  %37 = vmatpush.msra.mxu0 0.0
  %38 = vmatpush.msra.mxu0 0.0
  %39 = vmatpush.msra.mxu0 0.0
  %40 = vmatpush.msra.mxu0 0.0
  %41 = vmatpush.msra.mxu0 %v28
  %42 = vmatpush.msra.mxu0 %v27
  %43 = vmatpush.msra.mxu0 %v26
  %44 = vmatpush.msra.mxu0 %v25
  %45 = vmatpush.msra.mxu0 %v24
  %46 = vmatpush.msra.mxu0 %v23
  %47 = vmatpush.msra.mxu0 %v22
  %48 = vmatpush.msra.mxu0 %v21
  %49 = vmatmul.f32.gmra.mxu0 %v31
  %v50 = vpop.f32.mrf.mxu0
  %v51 = vadd.f32 0.0, %v50
  %52 = vdwg.mxu0
  %v53 = vadd.f32 %v19, %v51
  %54 = vst [vmem:[#allocation2] sm:$0xff] %v53
  // Predicated region
  $region14: #{down_block.2} parent=0 // pred_check
    %p55 = pneg %p14
  $region15: #{down_block.2} parent=0 // pred_check_branch
    %57 = sbr.rel (%p55) target = $region17
  $region16: #{down_block.2} parent=0 // pred_region
    %v58 = vld [vmem:[#allocation2] sm:$0xff]
    %59 = vst [vmem:[%s2] sm:$0xff] %v58
    %60 = vadd.xlane.f32.xlu0 %v58
    %v61 = vpop.xlane.xlu0 %60
    %vm62 = vcmask 7168
    %63 = vst.msk [vmem:[%s3] sm:$0xff] %vm62, %v61
    %v64 = vmul.f32 %v58, %v58
    %65 = vadd.xlane.f32.xlu0 %v64
    %v66 = vpop.xlane.xlu0 %65
    %67 = vst.msk [vmem:[%s4] sm:$0xff] %vm62, %v66
  $region17: #{down_block.2} parent=0 // pred_fallthru
    _
  // Predicated region
  $region18: #{down_block.2} parent=0 // pred_check
    _
  $region19: #{down_block.2} parent=0 // pred_check_branch
    %69 = sbr.rel (0) target = $region21
  $region20: #{down_block.2} parent=0 // pred_region
    _
  $region21: #{down_block.2} parent=0 // pred_fallthru
    _
  // Predicated region
  $region22: #{down_block.2} parent=0 // pred_check
    _
  $region23: #{down_block.2} parent=0 // pred_check_branch
    %71 = sbr.rel (0) target = $region25
  $region24: #{down_block.2} parent=0 // pred_region
    _
  $region25: #{down_block.2} parent=0 // pred_fallthru
    _
  // Predicated region
  $region26: #{down_block.2} parent=0 // pred_check
    _
  $region27: #{down_block.2} parent=0 // pred_check_branch
    %73 = sbr.rel (0) target = $region29
  $region28: #{down_block.2} parent=0 // pred_region
    _
  $region29: #{down_block.2} parent=0 // pred_fallthru
    _
  // Predicated region
  $region30: #{down_block.2} parent=0 // pred_check
    _
  $region31: #{down_block.2} parent=0 // pred_check_branch
    %75 = sbr.rel (0) target = $region33
  $region32: #{down_block.2} parent=0 // pred_region
    _
  $region33: #{down_block.2} parent=0 // pred_fallthru
    _
  // Predicated region
  $region34: #{down_block.2} parent=0 // pred_check
    _
  $region35: #{down_block.2} parent=0 // pred_check_branch
    %77 = sbr.rel (0) target = $region37
  $region36: #{down_block.2} parent=0 // pred_region
    _
  $region37: #{down_block.2} parent=0 // pred_fallthru
    _
  // Predicated region
  $region38: #{down_block.2} parent=0 // pred_check
    _
  $region39: #{down_block.2} parent=0 // pred_check_branch
    %79 = sbr.rel (0) target = $region41
  $region40: #{down_block.2} parent=0 // pred_region
    _
  $region41: #{down_block.2} parent=0 // pred_fallthru
    _

</llo_original>
